<compile_context>
chip_gen: v6e
topology: v6e:2x2x1
jax: 0.10.0
libtpu: 0.0.40
codegen_flags: <defaults>
</compile_context>

<pallas_src>
import math
import functools

import jax
import jax.numpy as jnp
from jax.experimental import pallas as pl
from jax.experimental.pallas import tpu as pltpu


def _round_up(x, m):
    return ((x + m - 1) // m) * m


def _sphere_kernel(inv_ref, label_ref, cos_ref, out_ref, *, margin):
    """One (TB, N) batch tile.

    inv_ref  : (1,)    f32 SMEM  -- 1 / (1 + lamb)
    label_ref: (TB, 1) i32 VMEM
    cos_ref  : (TB, N) VMEM      -- cosine scores (any float dtype; upcast here)
    out_ref  : (TB, N) VMEM      -- same dtype as the input
    """
    x_raw = cos_ref[...].astype(jnp.float32)
    inv = inv_ref[0]

    # Per-row L2 norm of the raw input (torch.norm(input, 2, 1)).
    norm = jnp.sqrt(jnp.sum(x_raw * x_raw, axis=-1, keepdims=True))       # (TB,1)

    x = jnp.clip(x_raw, -1.0, 1.0)

    tb, nn = x.shape
    col = jax.lax.broadcasted_iota(jnp.int32, (tb, nn), 1)
    is_label = col == label_ref[...]       # (TB, N), exactly one hit per valid row

    # Extract x at the label column with a masked lane-reduce (XLU slot).
    x_lab = jnp.sum(jnp.where(is_label, x, 0.0), axis=-1, keepdims=True)  # (TB,1)

    # --- All margin math on the tiny (TB, 1) column (essentially free). ---
    # cos(m*theta) as the Chebyshev polynomial T_m(x); margin is static.
    if margin == 0:
        cmt = jnp.ones_like(x_lab)
    elif margin == 1:
        cmt = x_lab
    elif margin == 2:
        cmt = 2.0 * x_lab * x_lab - 1.0
    elif margin == 3:
        cmt = (4.0 * x_lab * x_lab - 3.0) * x_lab
    elif margin == 4:
        x2 = x_lab * x_lab
        cmt = 8.0 * x2 * x2 - 8.0 * x2 + 1.0
    else:  # margin == 5
        x2 = x_lab * x_lab
        cmt = ((16.0 * x2 - 20.0) * x2 + 5.0) * x_lab

    # k = floor(margin * acos(x) / pi) without acos:
    #   floor(m*theta/pi) >= j  <=>  theta >= j*pi/m  <=>  x <= cos(j*pi/m)
    # f32 accumulation; (-1)^k as a product of +/-1 selects (no int32 path).
    # Note: exactly at a boundary x == cos(j*pi/m), fp rounding can flip k vs
    # the acos reference -- intentional tolerance.
    k_f = jnp.zeros_like(x_lab)
    sign = jnp.ones_like(x_lab)
    for j in range(1, margin + 1):
        crossed = x_lab <= math.cos(j * math.pi / margin)
        k_f = k_f + crossed.astype(jnp.float32)
        sign = sign * jnp.where(crossed, -1.0, 1.0)
    phi = sign * cmt - 2.0 * k_f

    delta = (phi - x_lab) * inv            # (TB, 1) per-row correction

    # Bulk path: clip(x)*norm, with the correction applied only on the label
    # column via a single select (no materialized one_hot tile).
    out = jnp.where(is_label, x + delta, x) * norm
    out_ref[...] = out.astype(out_ref.dtype)


class SphereProductPallas:
    """JAX/Pallas port of SphereProduct.forward: (cosine, label) -> logits."""

    def __init__(self, in_features, out_features, margin=2):
        self.in_features = in_features
        self.out_features = out_features
        self.margin = margin
        self.base = 1000.0
        self.gamma = 0.12
        self.power = 1
        self.LambdaMin = 5.0
        self.iter = 0
        assert self.margin < 6

    def __call__(self, cosine, label):
        # Host-side annealing schedule (stateful, like the torch module).
        self.iter += 1
        self.lamb = max(self.LambdaMin,
                        self.base * (1 + self.gamma * self.iter) ** (-1 * self.power))

        B, N = cosine.shape
        assert N == self.out_features

        SUB, LANE = 8, 128
        np_eff = _round_up(N, LANE)          # internal VMEM lane padding (sizing only)
        ebytes = jnp.dtype(cosine.dtype).itemsize
        # Double-buffered in + out tiles; output dtype matches input dtype.
        row_bytes = 2 * (ebytes + ebytes) * np_eff
        budget = 24 * 1024 * 1024            # headroom under the 32 MiB scoped limit
        tb_cap = max(SUB, (budget // row_bytes) // SUB * SUB)

        B8 = _round_up(B, SUB)
        if B <= SUB:
            TB = B                           # full-extent batch dim (exempt from /8)
        else:
            TB = min(B8, tb_cap)
            # v7x megacore: ensure >= 2 grid steps on the "parallel" batch axis
            # whenever the batch allows it (no-op on single-TC v5e/v6e).
            if B8 // TB < 2 and B8 >= 2 * SUB:
                TB = max(SUB, (B8 // 2) // SUB * SUB)

        # TODO(synk): for huge class counts where even an 8-row full-N block
        # exceeds the VMEM limit, split the class axis into a second
        # "arbitrary" grid dim and carry the row norm with a two-pass scheme.

        grid = (pl.cdiv(B, TB),)
        lab2 = label.astype(jnp.int32).reshape(B, 1)
        inv = jnp.full((1,), 1.0 / (1.0 + self.lamb), dtype=jnp.float32)

        kernel = functools.partial(_sphere_kernel, margin=self.margin)

        out = pl.pallas_call(
            kernel,
            out_shape=jax.ShapeDtypeStruct((B, N), cosine.dtype),
            grid=grid,
            in_specs=[
                pl.BlockSpec(memory_space=pltpu.MemorySpace.SMEM),   # 1/(1+lamb)
                pl.BlockSpec((TB, 1), lambda i: (i, 0)),             # labels
                pl.BlockSpec((TB, N), lambda i: (i, 0)),             # cosine tile
            ],
            out_specs=pl.BlockSpec((TB, N), lambda i: (i, 0)),
            compiler_params=pltpu.CompilerParams(
                dimension_semantics=("parallel",),
                vmem_limit_bytes=32 * 1024 * 1024,
            ),
        )(inv, lab2, cosine)

        return out


def _reference_forward(margin, lamb, cosine, label):
    """Pure-jnp mirror of the torch forward (uses acos + 3.14159265)."""
    B, N = cosine.shape
    cosine = cosine.astype(jnp.float32)
    cos_theta = jnp.clip(cosine, -1.0, 1.0)
    mlambda = [
        lambda x: x ** 0,
        lambda x: x ** 1,
        lambda x: 2 * x ** 2 - 1,
        lambda x: 4 * x ** 3 - 3 * x,
        lambda x: 8 * x ** 4 - 8 * x ** 2 + 1,
        lambda x: 16 * x ** 5 - 20 * x ** 3 + 5 * x,
    ]
    cos_m_theta = mlambda[margin](cos_theta)
    theta = jnp.arccos(cos_theta)
    k = jnp.floor(margin * theta / 3.14159265)
    sign = jnp.where(jnp.mod(k, 2.0) == 0.0, 1.0, -1.0)   # (-1)**k, k integer-valued
    phi_theta = sign * cos_m_theta - 2.0 * k
    norm = jnp.sqrt(jnp.sum(cosine * cosine, axis=1))
    one_hot = jax.nn.one_hot(label, N, dtype=jnp.float32)
    out = one_hot * (phi_theta - cos_theta) / (1.0 + lamb) + cos_theta
    return out * norm[:, None]


if __name__ == "__main__":
    B, D, N = 8, 32, 200      # batch, in_features, out_features (classes)
    key = jax.random.PRNGKey(0)
    k_cos, k_lab = jax.random.split(key)

    # Deterministic cosine scores in [-0.97, -0.02] U [0.02, 0.97]: stays away
    # from the floor(m*acos(x)/pi) boundaries (0 and -1 for margin=2) so the
    # kernel's threshold form matches the acos reference exactly.
    raw = jax.random.uniform(k_cos, (B, N), minval=-0.95, maxval=0.95,
                             dtype=jnp.float32)
    cosine = jnp.where(raw >= 0, raw + 0.02, raw - 0.02)
    label = jax.random.randint(k_lab, (B,), 0, N, dtype=jnp.int32)

    mod = SphereProductPallas(in_features=D, out_features=N, margin=2)
    out = mod(cosine, label)
    out = jax.block_until_ready(out)

    ref = _reference_forward(mod.margin, mod.lamb, cosine, label)
    assert out.shape == (B, N)
    assert out.dtype == cosine.dtype
    assert jnp.allclose(out.astype(jnp.float32), ref, atol=1e-4, rtol=1e-4), \
        "mismatch vs reference"

    print("KERNEL_OK")
</pallas_src>

<mosaic_0001>
module attributes {stable_mosaic.version = 11 : i64} {
  func.func @_sphere_kernel(%arg0: i32, %arg1: memref<1xf32, #tpu.memory_space<smem>>, %arg2: memref<8x1xi32, #tpu.memory_space<vmem>>, %arg3: memref<8x200xf32, #tpu.memory_space<vmem>>, %arg4: memref<8x200xf32, #tpu.memory_space<vmem>>) attributes {dimension_semantics = [#tpu.dimension_semantics<parallel>], iteration_bounds = array<i64: 1>, scalar_prefetch = 0 : i64, scratch_operands = 0 : i64, tpu.core_type = #tpu.core_type<tc>, window_params = [{transform_indices = @transform_0, window_bounds = array<i64: 1>}, {transform_indices = @transform_1, window_bounds = array<i64: 8, 1>}, {transform_indices = @transform_2, window_bounds = array<i64: 8, 200>}, {transform_indices = @transform_3, window_bounds = array<i64: 8, 200>}]} {
    %c0 = arith.constant 0 : index
    %c0_0 = arith.constant 0 : index
    %0 = vector.load %arg3[%c0, %c0_0] : memref<8x200xf32, #tpu.memory_space<vmem>>, vector<8x200xf32>
    %c0_1 = arith.constant 0 : index
    %1 = memref.load %arg1[%c0_1] : memref<1xf32, #tpu.memory_space<smem>>
    %2 = arith.mulf %0, %0 : vector<8x200xf32>
    %cst = arith.constant dense<0.000000e+00> : vector<8xf32>
    %3 = vector.multi_reduction <add>, %2, %cst [1] : vector<8x200xf32> to vector<8xf32>
    %4 = vector.shape_cast %3 : vector<8xf32> to vector<8x1xf32>
    %5 = math.sqrt %4 : vector<8x1xf32>
    %cst_2 = arith.constant -1.000000e+00 : f32
    %cst_3 = arith.constant 1.000000e+00 : f32
    %6 = vector.broadcast %cst_2 : f32 to vector<8x200xf32>
    %7 = arith.maximumf %6, %0 : vector<8x200xf32>
    %8 = vector.broadcast %cst_3 : f32 to vector<8x200xf32>
    %9 = arith.minimumf %8, %7 : vector<8x200xf32>
    %10 = tpu.iota {dimensions = array<i32: 1>} : vector<8x200xi32>
    %c0_4 = arith.constant 0 : index
    %c0_5 = arith.constant 0 : index
    %11 = vector.load %arg2[%c0_4, %c0_5] : memref<8x1xi32, #tpu.memory_space<vmem>>, vector<8x1xi32>
    %12 = vector.broadcast %11 : vector<8x1xi32> to vector<8x200xi32>
    %13 = arith.cmpi eq, %10, %12 : vector<8x200xi32>
    %cst_6 = arith.constant 0.000000e+00 : f32
    %14 = vector.broadcast %cst_6 : f32 to vector<8x200xf32>
    %15 = arith.select %13, %9, %14 : vector<8x200xi1>, vector<8x200xf32>
    %cst_7 = arith.constant dense<0.000000e+00> : vector<8xf32>
    %16 = vector.multi_reduction <add>, %15, %cst_7 [1] : vector<8x200xf32> to vector<8xf32>
    %17 = vector.shape_cast %16 : vector<8xf32> to vector<8x1xf32>
    %cst_8 = arith.constant 2.000000e+00 : f32
    %18 = vector.broadcast %cst_8 : f32 to vector<8x1xf32>
    %19 = arith.mulf %18, %17 : vector<8x1xf32>
    %20 = arith.mulf %19, %17 : vector<8x1xf32>
    %cst_9 = arith.constant 1.000000e+00 : f32
    %21 = vector.broadcast %cst_9 : f32 to vector<8x1xf32>
    %22 = arith.subf %20, %21 : vector<8x1xf32>
    %cst_10 = arith.constant 0.000000e+00 : f32
    %23 = vector.broadcast %cst_10 : f32 to vector<8x1xf32>
    %cst_11 = arith.constant 1.000000e+00 : f32
    %24 = vector.broadcast %cst_11 : f32 to vector<8x1xf32>
    %cst_12 = arith.constant 6.12323426E-17 : f32
    %25 = vector.broadcast %cst_12 : f32 to vector<8x1xf32>
    %26 = arith.cmpf ole, %17, %25 : vector<8x1xf32>
    %27 = arith.extui %26 : vector<8x1xi1> to vector<8x1xi32>
    %28 = arith.sitofp %27 : vector<8x1xi32> to vector<8x1xf32>
    %29 = arith.addf %23, %28 : vector<8x1xf32>
    %cst_13 = arith.constant -1.000000e+00 : f32
    %cst_14 = arith.constant 1.000000e+00 : f32
    %30 = vector.broadcast %cst_13 : f32 to vector<8x1xf32>
    %31 = vector.broadcast %cst_14 : f32 to vector<8x1xf32>
    %32 = arith.select %26, %30, %31 : vector<8x1xi1>, vector<8x1xf32>
    %33 = arith.mulf %24, %32 : vector<8x1xf32>
    %cst_15 = arith.constant -1.000000e+00 : f32
    %34 = vector.broadcast %cst_15 : f32 to vector<8x1xf32>
    %35 = arith.cmpf ole, %17, %34 : vector<8x1xf32>
    %36 = arith.extui %35 : vector<8x1xi1> to vector<8x1xi32>
    %37 = arith.sitofp %36 : vector<8x1xi32> to vector<8x1xf32>
    %38 = arith.addf %29, %37 : vector<8x1xf32>
    %cst_16 = arith.constant -1.000000e+00 : f32
    %cst_17 = arith.constant 1.000000e+00 : f32
    %39 = vector.broadcast %cst_16 : f32 to vector<8x1xf32>
    %40 = vector.broadcast %cst_17 : f32 to vector<8x1xf32>
    %41 = arith.select %35, %39, %40 : vector<8x1xi1>, vector<8x1xf32>
    %42 = arith.mulf %33, %41 : vector<8x1xf32>
    %43 = arith.mulf %42, %22 : vector<8x1xf32>
    %cst_18 = arith.constant 2.000000e+00 : f32
    %44 = vector.broadcast %cst_18 : f32 to vector<8x1xf32>
    %45 = arith.mulf %44, %38 : vector<8x1xf32>
    %46 = arith.subf %43, %45 : vector<8x1xf32>
    %47 = arith.subf %46, %17 : vector<8x1xf32>
    %48 = vector.broadcast %1 : f32 to vector<8x1xf32>
    %49 = arith.mulf %47, %48 : vector<8x1xf32>
    %50 = vector.broadcast %49 : vector<8x1xf32> to vector<8x200xf32>
    %51 = arith.addf %9, %50 : vector<8x200xf32>
    %52 = arith.select %13, %51, %9 : vector<8x200xi1>, vector<8x200xf32>
    %53 = vector.broadcast %5 : vector<8x1xf32> to vector<8x200xf32>
    %54 = arith.mulf %52, %53 : vector<8x200xf32>
    %c0_19 = arith.constant 0 : index
    %c0_20 = arith.constant 0 : index
    %55 = vector.load %arg4[%c0_19, %c0_20] : memref<8x200xf32, #tpu.memory_space<vmem>>, vector<8x200xf32>
    tpu.vector_store %arg4[%c0_19, %c0_20], %54 {strides = array<i32>} : memref<8x200xf32, #tpu.memory_space<vmem>>, vector<8x200xf32>,
    return
  }
  func.func @transform_0(%arg0: i32) -> i32 {
    %c0_i32 = arith.constant 0 : i32
    %c0_i32_0 = arith.constant 0 : i32
    return %c0_i32 : i32
  }
  func.func @transform_1(%arg0: i32) -> (i32, i32) {
    %c0_i32 = arith.constant 0 : i32
    %c0_i32_0 = arith.constant 0 : i32
    return %arg0, %c0_i32 : i32, i32
  }
  func.func @transform_2(%arg0: i32) -> (i32, i32) {
    %c0_i32 = arith.constant 0 : i32
    %c0_i32_0 = arith.constant 0 : i32
    return %arg0, %c0_i32 : i32, i32
  }
  func.func @transform_3(%arg0: i32) -> (i32, i32) {
    %c0_i32 = arith.constant 0 : i32
    %c0_i32_0 = arith.constant 0 : i32
    return %arg0, %c0_i32 : i32, i32
  }
}

</mosaic_0001>

<llo_original>
// kernel: tpu_custom_call.1
$region0: #{tpu_custom_call.1}
  #allocation0 [shape = 'u32[]', space=smem, size = 0x4, offset = 0x4, fixed_abs, tag = 'smem constant byte address 0x4 - core index']
  #allocation1 [shape = 'u32[144,128]{1,0:T(1,128)}', space=vmem, size = 0x12000, scoped, tag = 'internal scratch']
  #allocation2 [shape = 'f32[1]{0:T(128)S(6)}', space=smem, size = 0x200, scoped, tag = 'scoped memory for tpu_custom_call.1']
  %s0 = inlined_call_operand.<no memory space> [shape: f32[1], index: 0, kind: input, shape index: {}]
  %s1 = inlined_call_operand.vmem [shape: s32[8,1], index: 1, kind: input, shape index: {}]
  %s2 = inlined_call_operand.hbm [shape: f32[8,200], index: 2, kind: input, shape index: {}]
  %s3 = inlined_call_operand.hbm [shape: f32[8,200], index: 3, kind: output, shape index: {}]
  %s4 = sld [smem:[#allocation0]]
  $region26: #{tpu_custom_call.1} parent=0
    _
  %s6 = ssub.s32 1, %s4
  %s7 = scalar_select 0, %s6, %s4
  %8 = sst [smem:[#allocation2]] %s0
  $region1: #{tpu_custom_call.1} parent=0
    #allocation3 [shape = 'u8[8192]{0}', space=vmem, size = 0x2000, scoped, tag = 'input window, operand 2, single buffered']
    #allocation4 [shape = 's32[1]{0}', space=sflag, size = 0x4, scoped, tag = 'scoped memory for tpu_custom_call.1']
    #allocation5 [shape = 's32[1]{0}', space=sflag, size = 0x4, scoped, tag = 'scoped memory for tpu_custom_call.1']
    #allocation6 [shape = 'u8[8192]{0}', space=vmem, size = 0x2000, scoped, tag = 'output window, operand 0, single buffered']
    %9 = vsyncpa [#allocation4], 0
    %10 = vsyncpa [#allocation5], 0
    // Predicated region
    $region2: #{tpu_custom_call.1} parent=1 // pred_check
      _
    $region3: #{tpu_custom_call.1} parent=1 // pred_check_branch
      %12 = sbr.rel (0) target = $region5
    $region4: #{tpu_custom_call.1} parent=1 // pred_region
      _
    $region5: #{tpu_custom_call.1} parent=1 // pred_fallthru
      _
    // Predicated region
    $region6: #{tpu_custom_call.1} parent=1 // pred_check
      _
    $region7: #{tpu_custom_call.1} parent=1 // pred_check_branch
      %14 = sbr.rel (0) target = $region9
    $region8: #{tpu_custom_call.1} parent=1 // pred_region
      _
    $region9: #{tpu_custom_call.1} parent=1 // pred_fallthru
      _
    // Predicated region
    $region10: #{tpu_custom_call.1} parent=1 // pred_check
      _
    $region11: #{tpu_custom_call.1} parent=1 // pred_check_branch
      %16 = sbr.rel (0) target = $region13
    $region12: #{tpu_custom_call.1} parent=1 // pred_region
      %s18 = ssub.s32 256, 256
      %19 = vsyncadd [#allocation4], %s18
      %s21 = sshll.u32 [#allocation3], 4
      %s22 = int_to_ptr.vmem [resolvable:$true] %s21
      %24 = dma.hbm_to_vmem [thread:$0]  %s2, 256, %s22, [#allocation4]
    $region13: #{tpu_custom_call.1} parent=1 // pred_fallthru
      _
    // Predicated region
    $region14: #{tpu_custom_call.1} parent=1 // pred_check
      _
    $region15: #{tpu_custom_call.1} parent=1 // pred_check_branch
      %26 = sbr.rel (0) target = $region17
    $region16: #{tpu_custom_call.1} parent=1 // pred_region
      %27 = dma.done [#allocation4], 256
    $region17: #{tpu_custom_call.1} parent=1 // pred_fallthru
      _
    %v28 = vld [vmem:[#allocation3] sm:$0xff]
    %v29 = vld [vmem:[#allocation3 + $0x8] sm:$0xff]
    %s30 = sld [smem:[#allocation2]]
    %v31 = vmul.f32 %v28, %v28
    %v32 = vmul.f32 %v29, %v29
    %vm33 = vcmask 588800
    %v34 = vsel %vm33, %v32, 0.0
    %v35 = vadd.f32 %v31, %v34
    %36 = vadd.xlane.f32.xlu0 %v35
    %v37 = vpop.xlane.xlu0 %36
    %v38 = vrsqrt.pop %v37
    %v39 = vmul.f32 %v37, %v38
    %vm40 = vcmp.eq.f32.partialorder %v37, inf
    %v41 = vsel %vm40, %v37, %v39
    %vm42 = vcmp.eq.f32.partialorder %v37, 0.0
    %v43 = vand.u32 %v37, 2147483648
    %v44 = vsel %vm42, %v43, %v41
    %v45 = vmax.f32 %v28, -1.0
    %v46 = vmax.f32 %v29, -1.0
    %v47 = vmin.f32 %v45, 1.0
    %v48 = vmin.f32 %v46, 1.0
    %v49 = vlaneseq
    %v50 = vand.u32 %v49, 127
    %v51 = vadd.s32 %v50, 128
    %v52 = vld [vmem:[%s1] sm:$0xff]
    %53 = vset.pattern.permute.xlu0 0
    %54 = vperm.xlu0 %53, %v52
    %v55 = vpop.permute.xlu0 %54
    %vm56 = vcmp.eq.s32.totalorder %v50, %v55
    %vm57 = vcmp.eq.s32.totalorder %v51, %v55
    %v58 = vsel %vm56, %v47, 0.0
    %v59 = vsel %vm57, %v48, 0.0
    %v60 = vsel %vm33, %v59, 0.0
    %v61 = vadd.f32 %v58, %v60
    %62 = vadd.xlane.f32.xlu0 %v61
    %v63 = vpop.xlane.xlu0 %62
    %v64 = vmul.f32 %v63, 2.0
    %v65 = vmul.f32 %v64, %v63
    %v66 = vsub.f32 %v65, 1.0
    %vm67 = vcmp.le.f32.partialorder %v63, 6.123234e-17
    %v68 = vsel %vm67, 1, 0
    %v69 = vcvt.s32.f32 %v68
    %v70 = vadd.f32 %v69, 0.0
    %v71 = vsel %vm67, -1.0, 1.0
    %vm72 = vcmp.le.f32.partialorder %v63, -1.0
    %v73 = vsel %vm72, 1, 0
    %v74 = vcvt.s32.f32 %v73
    %v75 = vadd.f32 %v70, %v74
    %v76 = vsel %vm72, -1.0, 1.0
    %v77 = vmul.f32 %v71, %v76
    %v78 = vmul.f32 %v77, %v66
    %v79 = vmul.f32 %v75, 2.0
    %v80 = vsub.f32 %v78, %v79
    %v81 = vsub.f32 %v80, %v63
    %v82 = vstv %s30
    %v83 = vmul.f32 %v81, %v82
    %v84 = vadd.f32 %v47, %v83
    %v85 = vadd.f32 %v48, %v83
    %v86 = vsel %vm56, %v84, %v47
    %v87 = vsel %vm57, %v85, %v48
    %v88 = vmul.f32 %v86, %v44
    %v89 = vmul.f32 %v87, %v44
    %90 = vst [vmem:[#allocation6] sm:$0xff] %v88
    %91 = vst.msk [vmem:[#allocation6 + $0x8] sm:$0xff] %vm33, %v89
    // Predicated region
    $region18: #{tpu_custom_call.1} parent=1 // pred_check
      _
    $region19: #{tpu_custom_call.1} parent=1 // pred_check_branch
      %93 = sbr.rel (0) target = $region21
    $region20: #{tpu_custom_call.1} parent=1 // pred_region
      %s95 = ssub.s32 256, 256
      %96 = vsyncadd [#allocation5], %s95
      %s98 = sshll.u32 [#allocation6], 4
      %s99 = int_to_ptr.vmem [resolvable:$true] %s98
      %101 = dma.vmem_to_hbm [thread:$0]  %s99, 256, %s3, [#allocation5]
    $region21: #{tpu_custom_call.1} parent=1 // pred_fallthru
      _
    // Predicated region
    $region22: #{tpu_custom_call.1} parent=1 // pred_check
      _
    $region23: #{tpu_custom_call.1} parent=1 // pred_check_branch
      %103 = sbr.rel (0) target = $region25
    $region24: #{tpu_custom_call.1} parent=1 // pred_region
      %104 = dma.done [#allocation5], 256
    $region25: #{tpu_custom_call.1} parent=1 // pred_fallthru
      _
    %105 = vsyncpa [#allocation4], 1
    %106 = vsyncpa [#allocation5], 1

</llo_original>
